<compile_context>
chip_gen: v5e
topology: v5e:2x2
jax: 0.10.0
libtpu: 0.0.40
codegen_flags: <defaults>
</compile_context>

<pallas_src>
import functools

import jax
import jax.numpy as jnp
from jax.experimental import pallas as pl
from jax.experimental.pallas import tpu as pltpu

STATE_DIM = 2
HIDDEN = 64
FC1 = 32
LN_EPS = 1e-5


def _round_up(x, m):
    return (x + m - 1) // m * m


def _pick_b_tile(B):
    """Sublane-aligned batch tile; >= 2 grid steps when B > 8 (v7x 2-TC occupancy)."""
    if B <= 8:
        return 8
    t = min(256, _round_up(pl.cdiv(B, 2), 8))   # cap at one 256^2 MXU tile (v6e/v7x)
    if t >= 16:
        t = min(256, _round_up(t, 16))           # keep 2 in-kernel sub-chains sublane-aligned
    return t


def critic_kernel(xp_ref,    # (T, Bt, 4H)  x @ W_ih^T + (b_ih+b_hh), gate cols [i,f,o,g]
                  whh_ref,   # (H, 4H)      W_hh^T, gate cols [i,f,o,g]
                  w1_ref,    # (H, 32)      fc1 weight^T
                  fcp_ref,   # (8, 32)      packed: [b1; gamma; beta; w2_row; b2_row; 0; 0; 0]
                  out_ref,   # (1, Bt)      lane-dense output row for this tile
                  *, n_chains):
    T = xp_ref.shape[0]
    Bt = xp_ref.shape[1]
    H = whh_ref.shape[0]
    hb = Bt // n_chains

    # Loop-invariant recurrent RHS: load once, reused by every unrolled step.
    whh = whh_ref[...]                                            # (H, 4H)

    def lstm_step(t, carry):
        xt = xp_ref[t]                                            # (Bt, 4H)
        new = []
        # n_chains independent dependency chains -> MXU/EUP/VPU overlap across halves.
        for j in range(n_chains):
            h = carry[2 * j]
            c = carry[2 * j + 1]
            gates = xt[j * hb:(j + 1) * hb, :] + jnp.dot(
                h, whh, preferred_element_type=jnp.float32)       # (hb, 4H)
            sig = jax.nn.sigmoid(gates[:, : 3 * H])               # one wide EUP pass [i | f | o]
            g_g = jnp.tanh(gates[:, 3 * H:])                      # one EUP pass [g]
            i_g = sig[:, :H]
            f_g = sig[:, H: 2 * H]
            o_g = sig[:, 2 * H: 3 * H]
            c_n = f_g * c + i_g * g_g
            h_n = o_g * jnp.tanh(c_n)
            new += [h_n, c_n]
        return tuple(new)

    init = tuple(jnp.zeros((hb, H), jnp.float32) for _ in range(2 * n_chains))
    # T is small and static; full unroll gives cross-iteration scheduling visibility.
    final = jax.lax.fori_loop(0, T, lstm_step, init, unroll=True)
    if n_chains == 1:
        h_last = final[0]
    else:
        h_last = jnp.concatenate([final[2 * j] for j in range(n_chains)], axis=0)  # (Bt, H)

    # Unpack the consolidated epilogue parameter slab.
    b1 = fcp_ref[0:1, :]
    gamma = fcp_ref[1:2, :]
    beta = fcp_ref[2:3, :]
    w2_row = fcp_ref[3:4, :]
    b2 = fcp_ref[4:5, 0:1]

    # fc: Linear(64,32) -> ReLU -> LayerNorm(32) -> Dropout(identity) -> Linear(32,1)
    z = jnp.dot(h_last, w1_ref[...], preferred_element_type=jnp.float32) + b1      # (Bt, 32)
    z = jnp.maximum(z, 0.0)
    mean = jnp.mean(z, axis=-1, keepdims=True)
    var = jnp.mean((z - mean) ** 2, axis=-1, keepdims=True)
    zn = (z - mean) * jax.lax.rsqrt(var + LN_EPS)
    zn = zn * gamma + beta
    # TODO(synk): nn.Dropout(0.4) is identity in eval mode; training-mode dropout not implemented.

    # Final projection in transposed form -> lane-dense (1, Bt) row store.
    v = jax.lax.dot_general(w2_row, zn, (((1,), (1,)), ((), ())),
                            preferred_element_type=jnp.float32) + b2               # (1, Bt)
    out_ref[...] = v


@jax.jit
def critic_forward(s, kparams):
    """s: (B, T, state_dim) float32. Returns (B,) float32 — matches value.squeeze(-1)."""
    w_ih_t, w_hh_t, b_lstm, w1_t, fcp = kparams
    B, T, _ = s.shape
    s = s.astype(jnp.float32)

    b_tile = _pick_b_tile(B)
    b_pad = _round_up(B, b_tile)
    num_tiles = b_pad // b_tile
    n_chains = 2 if (b_tile % 16 == 0) else 1

    # Pad the tiny (B, T, 2) input BEFORE the projection (padded rows are
    # independent and discarded below) — avoids copying the (T, B, 256) tensor.
    if b_pad != B:
        s = jnp.pad(s, ((0, b_pad - B), (0, 0), (0, 0)))

    # Hoisted input projection: ONE lane-dense matmul for all (t, b); bias folded in.
    x_proj = jnp.einsum("btd,dg->tbg", s, w_ih_t,
                        preferred_element_type=jnp.float32) + b_lstm               # (T, b_pad, 4H)

    kernel = functools.partial(critic_kernel, n_chains=n_chains)
    const = lambda i: (0, 0)   # weights: constant block index -> stay VMEM-resident

    out = pl.pallas_call(
        kernel,
        out_shape=jax.ShapeDtypeStruct((num_tiles, b_tile), jnp.float32),
        grid=(num_tiles,),
        in_specs=[
            pl.BlockSpec((T, b_tile, 4 * HIDDEN), lambda i: (0, i, 0)),
            pl.BlockSpec((HIDDEN, 4 * HIDDEN), const),
            pl.BlockSpec((HIDDEN, FC1), const),
            pl.BlockSpec((8, FC1), const),
        ],
        out_specs=pl.BlockSpec((1, b_tile), lambda i: (i, 0)),
        compiler_params=pltpu.CompilerParams(
            dimension_semantics=("parallel",),
            vmem_limit_bytes=32 << 20,
        ),
    )(x_proj, w_hh_t, w1_t, fcp)

    return out.reshape(-1)[:B]


def init_torch_params(key, state_dim=STATE_DIM):
    """Deterministic synthetic parameters in PyTorch's native layout / gate order [i, f, g, o]."""
    ks = jax.random.split(key, 8)
    k_lstm = 1.0 / jnp.sqrt(HIDDEN)
    k_fc1 = 1.0 / jnp.sqrt(HIDDEN)
    k_fc2 = 1.0 / jnp.sqrt(FC1)
    w_ih = jax.random.uniform(ks[0], (4 * HIDDEN, state_dim), jnp.float32, -k_lstm, k_lstm)
    w_hh = jax.random.uniform(ks[1], (4 * HIDDEN, HIDDEN), jnp.float32, -k_lstm, k_lstm)
    b_ih = jax.random.uniform(ks[2], (4 * HIDDEN,), jnp.float32, -k_lstm, k_lstm)
    b_hh = jax.random.uniform(ks[3], (4 * HIDDEN,), jnp.float32, -k_lstm, k_lstm)
    w1 = jax.random.uniform(ks[4], (FC1, HIDDEN), jnp.float32, -k_fc1, k_fc1)
    b1 = jax.random.uniform(ks[5], (FC1,), jnp.float32, -k_fc1, k_fc1)
    gamma = jnp.ones((FC1,), jnp.float32)    # nn.LayerNorm default init
    beta = jnp.zeros((FC1,), jnp.float32)
    w2 = jax.random.uniform(ks[6], (1, FC1), jnp.float32, -k_fc2, k_fc2)
    b2 = jax.random.uniform(ks[7], (1,), jnp.float32, -k_fc2, k_fc2)
    return (w_ih, w_hh, b_ih, b_hh, w1, b1, gamma, beta, w2, b2)


def prepare_kernel_params(torch_params):
    """PyTorch layout -> kernel layout: transpose, fold LSTM biases, gate order [i,f,o,g],
    pack the five tiny epilogue params into one (8, 32) slab."""
    w_ih, w_hh, b_ih, b_hh, w1, b1, gamma, beta, w2, b2 = torch_params
    H = HIDDEN
    perm = jnp.concatenate([jnp.arange(0, H),           # i
                            jnp.arange(H, 2 * H),       # f
                            jnp.arange(3 * H, 4 * H),   # o
                            jnp.arange(2 * H, 3 * H)])  # g
    w_ih_t = jnp.transpose(w_ih[perm])                  # (D, 4H)
    w_hh_t = jnp.transpose(w_hh[perm])                  # (H, 4H)
    b_lstm = (b_ih + b_hh)[perm][None, :]               # (1, 4H)
    fcp = jnp.zeros((8, FC1), jnp.float32)
    fcp = fcp.at[0].set(b1)
    fcp = fcp.at[1].set(gamma)
    fcp = fcp.at[2].set(beta)
    fcp = fcp.at[3].set(w2[0])
    fcp = fcp.at[4].set(jnp.full((FC1,), b2[0], jnp.float32))
    return (w_ih_t, w_hh_t, b_lstm, jnp.transpose(w1), fcp)


def critic_reference(s, torch_params):
    """Pure-JAX reference in PyTorch semantics (gate order [i, f, g, o])."""
    w_ih, w_hh, b_ih, b_hh, w1, b1, gamma, beta, w2, b2 = torch_params
    B, T, _ = s.shape
    H = HIDDEN
    h = jnp.zeros((B, H), jnp.float32)
    c = jnp.zeros((B, H), jnp.float32)
    for t in range(T):
        gates = s[:, t, :] @ w_ih.T + h @ w_hh.T + b_ih + b_hh
        i_g = jax.nn.sigmoid(gates[:, 0 * H:1 * H])
        f_g = jax.nn.sigmoid(gates[:, 1 * H:2 * H])
        g_g = jnp.tanh(gates[:, 2 * H:3 * H])
        o_g = jax.nn.sigmoid(gates[:, 3 * H:4 * H])
        c = f_g * c + i_g * g_g
        h = o_g * jnp.tanh(c)
    z = jnp.maximum(h @ w1.T + b1, 0.0)
    mean = z.mean(-1, keepdims=True)
    var = ((z - mean) ** 2).mean(-1, keepdims=True)
    zn = (z - mean) / jnp.sqrt(var + LN_EPS) * gamma + beta
    return (zn @ w2.T + b2)[:, 0]


if __name__ == "__main__":
    key = jax.random.PRNGKey(0)
    k_param, k_in1, k_in2 = jax.random.split(key, 3)

    torch_params = init_torch_params(k_param, state_dim=STATE_DIM)
    kparams = prepare_kernel_params(torch_params)

    # Primary small case: B=2, T=8 (single tile, single chain).
    B1, T = 2, 8
    s1 = jax.random.normal(k_in1, (B1, T, STATE_DIM), jnp.float32)
    v1 = critic_forward(s1, kparams)
    jax.block_until_ready(v1)
    assert v1.shape == (B1,), v1.shape
    err1 = float(jnp.max(jnp.abs(v1 - critic_reference(s1, torch_params))))
    assert err1 < 1e-3, f"mismatch vs reference (B={B1}): max abs err = {err1}"

    # Larger batch: exercises 2 grid tiles (v7x 2-TC path) + 2 interleaved LSTM sub-chains.
    B2 = 40
    s2 = jax.random.normal(k_in2, (B2, T, STATE_DIM), jnp.float32)
    v2 = critic_forward(s2, kparams)
    jax.block_until_ready(v2)
    assert v2.shape == (B2,), v2.shape
    err2 = float(jnp.max(jnp.abs(v2 - critic_reference(s2, torch_params))))
    assert err2 < 1e-3, f"mismatch vs reference (B={B2}): max abs err = {err2}"

    print("KERNEL_OK")
</pallas_src>

<mosaic_0001>
module attributes {stable_mosaic.version = 11 : i64} {
  func.func @critic_kernel(%arg0: i32, %arg1: memref<8x8x256xf32, #tpu.memory_space<vmem>>, %arg2: memref<64x256xf32, #tpu.memory_space<vmem>>, %arg3: memref<64x32xf32, #tpu.memory_space<vmem>>, %arg4: memref<8x32xf32, #tpu.memory_space<vmem>>, %arg5: memref<1x8xf32, #tpu.memory_space<vmem>>) attributes {dimension_semantics = [#tpu.dimension_semantics<parallel>], iteration_bounds = array<i64: 1>, scalar_prefetch = 0 : i64, scratch_operands = 0 : i64, tpu.core_type = #tpu.core_type<tc>, window_params = [{transform_indices = @transform_0, window_bounds = array<i64: 8, 8, 256>}, {pipeline_mode = #tpu.pipeline_mode<synchronous>, transform_indices = @transform_1, window_bounds = array<i64: 64, 256>}, {pipeline_mode = #tpu.pipeline_mode<synchronous>, transform_indices = @transform_2, window_bounds = array<i64: 64, 32>}, {pipeline_mode = #tpu.pipeline_mode<synchronous>, transform_indices = @transform_3, window_bounds = array<i64: 8, 32>}, {transform_indices = @transform_4, window_bounds = array<i64: 1, 8>}]} {
    %c0 = arith.constant 0 : index
    %c0_0 = arith.constant 0 : index
    %0 = vector.load %arg2[%c0, %c0_0] : memref<64x256xf32, #tpu.memory_space<vmem>>, vector<64x256xf32>
    %cst = arith.constant 0.000000e+00 : f32
    %1 = vector.broadcast %cst : f32 to vector<8x64xf32>
    %cst_1 = arith.constant 0.000000e+00 : f32
    %2 = vector.broadcast %cst_1 : f32 to vector<8x64xf32>
    %c0_i32 = arith.constant 0 : i32
    %3 = arith.index_cast %c0_i32 : i32 to index
    %c0_2 = arith.constant 0 : index
    %c0_3 = arith.constant 0 : index
    %4 = vector.load %arg1[%3, %c0_2, %c0_3] : memref<8x8x256xf32, #tpu.memory_space<vmem>>, vector<1x8x256xf32>
    %5 = vector.shape_cast %4 : vector<1x8x256xf32> to vector<8x256xf32>
    %cst_4 = arith.constant dense<0.000000e+00> : vector<8x256xf32>
    %6 = tpu.matmul %1, %0, %cst_4 {dimension_numbers = #tpu.dot_dimension_numbers<[1], [0], [0], [1], [0, 0, 1, 1], [], []>} : vector<8x64xf32>, vector<64x256xf32>, vector<8x256xf32> -> vector<8x256xf32>
    %7 = arith.addf %5, %6 : vector<8x256xf32>
    %8 = vector.extract_strided_slice %7 {offsets = [0, 0], sizes = [8, 192], strides = [1, 1]} : vector<8x256xf32> to vector<8x192xf32>
    %9 = arith.negf %8 : vector<8x192xf32>
    %10 = math.exp %9 : vector<8x192xf32>
    %cst_5 = arith.constant 1.000000e+00 : f32
    %11 = vector.broadcast %cst_5 : f32 to vector<8x192xf32>
    %12 = arith.addf %11, %10 : vector<8x192xf32>
    %13 = arith.divf %11, %12 : vector<8x192xf32>
    %14 = vector.extract_strided_slice %7 {offsets = [0, 192], sizes = [8, 64], strides = [1, 1]} : vector<8x256xf32> to vector<8x64xf32>
    %15 = math.tanh %14 : vector<8x64xf32>
    %16 = vector.extract_strided_slice %13 {offsets = [0, 0], sizes = [8, 64], strides = [1, 1]} : vector<8x192xf32> to vector<8x64xf32>
    %17 = vector.extract_strided_slice %13 {offsets = [0, 64], sizes = [8, 64], strides = [1, 1]} : vector<8x192xf32> to vector<8x64xf32>
    %18 = vector.extract_strided_slice %13 {offsets = [0, 128], sizes = [8, 64], strides = [1, 1]} : vector<8x192xf32> to vector<8x64xf32>
    %19 = arith.mulf %17, %2 : vector<8x64xf32>
    %20 = arith.mulf %16, %15 : vector<8x64xf32>
    %21 = arith.addf %19, %20 : vector<8x64xf32>
    %22 = math.tanh %21 : vector<8x64xf32>
    %23 = arith.mulf %18, %22 : vector<8x64xf32>
    %c1_i32 = arith.constant 1 : i32
    %24 = arith.index_cast %c1_i32 : i32 to index
    %c0_6 = arith.constant 0 : index
    %c0_7 = arith.constant 0 : index
    %25 = vector.load %arg1[%24, %c0_6, %c0_7] : memref<8x8x256xf32, #tpu.memory_space<vmem>>, vector<1x8x256xf32>
    %26 = vector.shape_cast %25 : vector<1x8x256xf32> to vector<8x256xf32>
    %cst_8 = arith.constant dense<0.000000e+00> : vector<8x256xf32>
    %27 = tpu.matmul %23, %0, %cst_8 {dimension_numbers = #tpu.dot_dimension_numbers<[1], [0], [0], [1], [0, 0, 1, 1], [], []>} : vector<8x64xf32>, vector<64x256xf32>, vector<8x256xf32> -> vector<8x256xf32>
    %28 = arith.addf %26, %27 : vector<8x256xf32>
    %29 = vector.extract_strided_slice %28 {offsets = [0, 0], sizes = [8, 192], strides = [1, 1]} : vector<8x256xf32> to vector<8x192xf32>
    %30 = arith.negf %29 : vector<8x192xf32>
    %31 = math.exp %30 : vector<8x192xf32>
    %cst_9 = arith.constant 1.000000e+00 : f32
    %32 = vector.broadcast %cst_9 : f32 to vector<8x192xf32>
    %33 = arith.addf %32, %31 : vector<8x192xf32>
    %34 = arith.divf %32, %33 : vector<8x192xf32>
    %35 = vector.extract_strided_slice %28 {offsets = [0, 192], sizes = [8, 64], strides = [1, 1]} : vector<8x256xf32> to vector<8x64xf32>
    %36 = math.tanh %35 : vector<8x64xf32>
    %37 = vector.extract_strided_slice %34 {offsets = [0, 0], sizes = [8, 64], strides = [1, 1]} : vector<8x192xf32> to vector<8x64xf32>
    %38 = vector.extract_strided_slice %34 {offsets = [0, 64], sizes = [8, 64], strides = [1, 1]} : vector<8x192xf32> to vector<8x64xf32>
    %39 = vector.extract_strided_slice %34 {offsets = [0, 128], sizes = [8, 64], strides = [1, 1]} : vector<8x192xf32> to vector<8x64xf32>
    %40 = arith.mulf %38, %21 : vector<8x64xf32>
    %41 = arith.mulf %37, %36 : vector<8x64xf32>
    %42 = arith.addf %40, %41 : vector<8x64xf32>
    %43 = math.tanh %42 : vector<8x64xf32>
    %44 = arith.mulf %39, %43 : vector<8x64xf32>
    %c2_i32 = arith.constant 2 : i32
    %45 = arith.index_cast %c2_i32 : i32 to index
    %c0_10 = arith.constant 0 : index
    %c0_11 = arith.constant 0 : index
    %46 = vector.load %arg1[%45, %c0_10, %c0_11] : memref<8x8x256xf32, #tpu.memory_space<vmem>>, vector<1x8x256xf32>
    %47 = vector.shape_cast %46 : vector<1x8x256xf32> to vector<8x256xf32>
    %cst_12 = arith.constant dense<0.000000e+00> : vector<8x256xf32>
    %48 = tpu.matmul %44, %0, %cst_12 {dimension_numbers = #tpu.dot_dimension_numbers<[1], [0], [0], [1], [0, 0, 1, 1], [], []>} : vector<8x64xf32>, vector<64x256xf32>, vector<8x256xf32> -> vector<8x256xf32>
    %49 = arith.addf %47, %48 : vector<8x256xf32>
    %50 = vector.extract_strided_slice %49 {offsets = [0, 0], sizes = [8, 192], strides = [1, 1]} : vector<8x256xf32> to vector<8x192xf32>
    %51 = arith.negf %50 : vector<8x192xf32>
    %52 = math.exp %51 : vector<8x192xf32>
    %cst_13 = arith.constant 1.000000e+00 : f32
    %53 = vector.broadcast %cst_13 : f32 to vector<8x192xf32>
    %54 = arith.addf %53, %52 : vector<8x192xf32>
    %55 = arith.divf %53, %54 : vector<8x192xf32>
    %56 = vector.extract_strided_slice %49 {offsets = [0, 192], sizes = [8, 64], strides = [1, 1]} : vector<8x256xf32> to vector<8x64xf32>
    %57 = math.tanh %56 : vector<8x64xf32>
    %58 = vector.extract_strided_slice %55 {offsets = [0, 0], sizes = [8, 64], strides = [1, 1]} : vector<8x192xf32> to vector<8x64xf32>
    %59 = vector.extract_strided_slice %55 {offsets = [0, 64], sizes = [8, 64], strides = [1, 1]} : vector<8x192xf32> to vector<8x64xf32>
    %60 = vector.extract_strided_slice %55 {offsets = [0, 128], sizes = [8, 64], strides = [1, 1]} : vector<8x192xf32> to vector<8x64xf32>
    %61 = arith.mulf %59, %42 : vector<8x64xf32>
    %62 = arith.mulf %58, %57 : vector<8x64xf32>
    %63 = arith.addf %61, %62 : vector<8x64xf32>
    %64 = math.tanh %63 : vector<8x64xf32>
    %65 = arith.mulf %60, %64 : vector<8x64xf32>
    %c3_i32 = arith.constant 3 : i32
    %66 = arith.index_cast %c3_i32 : i32 to index
    %c0_14 = arith.constant 0 : index
    %c0_15 = arith.constant 0 : index
    %67 = vector.load %arg1[%66, %c0_14, %c0_15] : memref<8x8x256xf32, #tpu.memory_space<vmem>>, vector<1x8x256xf32>
    %68 = vector.shape_cast %67 : vector<1x8x256xf32> to vector<8x256xf32>
    %cst_16 = arith.constant dense<0.000000e+00> : vector<8x256xf32>
    %69 = tpu.matmul %65, %0, %cst_16 {dimension_numbers = #tpu.dot_dimension_numbers<[1], [0], [0], [1], [0, 0, 1, 1], [], []>} : vector<8x64xf32>, vector<64x256xf32>, vector<8x256xf32> -> vector<8x256xf32>
    %70 = arith.addf %68, %69 : vector<8x256xf32>
    %71 = vector.extract_strided_slice %70 {offsets = [0, 0], sizes = [8, 192], strides = [1, 1]} : vector<8x256xf32> to vector<8x192xf32>
    %72 = arith.negf %71 : vector<8x192xf32>
    %73 = math.exp %72 : vector<8x192xf32>
    %cst_17 = arith.constant 1.000000e+00 : f32
    %74 = vector.broadcast %cst_17 : f32 to vector<8x192xf32>
    %75 = arith.addf %74, %73 : vector<8x192xf32>
    %76 = arith.divf %74, %75 : vector<8x192xf32>
    %77 = vector.extract_strided_slice %70 {offsets = [0, 192], sizes = [8, 64], strides = [1, 1]} : vector<8x256xf32> to vector<8x64xf32>
    %78 = math.tanh %77 : vector<8x64xf32>
    %79 = vector.extract_strided_slice %76 {offsets = [0, 0], sizes = [8, 64], strides = [1, 1]} : vector<8x192xf32> to vector<8x64xf32>
    %80 = vector.extract_strided_slice %76 {offsets = [0, 64], sizes = [8, 64], strides = [1, 1]} : vector<8x192xf32> to vector<8x64xf32>
    %81 = vector.extract_strided_slice %76 {offsets = [0, 128], sizes = [8, 64], strides = [1, 1]} : vector<8x192xf32> to vector<8x64xf32>
    %82 = arith.mulf %80, %63 : vector<8x64xf32>
    %83 = arith.mulf %79, %78 : vector<8x64xf32>
    %84 = arith.addf %82, %83 : vector<8x64xf32>
    %85 = math.tanh %84 : vector<8x64xf32>
    %86 = arith.mulf %81, %85 : vector<8x64xf32>
    %c4_i32 = arith.constant 4 : i32
    %87 = arith.index_cast %c4_i32 : i32 to index
    %c0_18 = arith.constant 0 : index
    %c0_19 = arith.constant 0 : index
    %88 = vector.load %arg1[%87, %c0_18, %c0_19] : memref<8x8x256xf32, #tpu.memory_space<vmem>>, vector<1x8x256xf32>
    %89 = vector.shape_cast %88 : vector<1x8x256xf32> to vector<8x256xf32>
    %cst_20 = arith.constant dense<0.000000e+00> : vector<8x256xf32>
    %90 = tpu.matmul %86, %0, %cst_20 {dimension_numbers = #tpu.dot_dimension_numbers<[1], [0], [0], [1], [0, 0, 1, 1], [], []>} : vector<8x64xf32>, vector<64x256xf32>, vector<8x256xf32> -> vector<8x256xf32>
    %91 = arith.addf %89, %90 : vector<8x256xf32>
    %92 = vector.extract_strided_slice %91 {offsets = [0, 0], sizes = [8, 192], strides = [1, 1]} : vector<8x256xf32> to vector<8x192xf32>
    %93 = arith.negf %92 : vector<8x192xf32>
    %94 = math.exp %93 : vector<8x192xf32>
    %cst_21 = arith.constant 1.000000e+00 : f32
    %95 = vector.broadcast %cst_21 : f32 to vector<8x192xf32>
    %96 = arith.addf %95, %94 : vector<8x192xf32>
    %97 = arith.divf %95, %96 : vector<8x192xf32>
    %98 = vector.extract_strided_slice %91 {offsets = [0, 192], sizes = [8, 64], strides = [1, 1]} : vector<8x256xf32> to vector<8x64xf32>
    %99 = math.tanh %98 : vector<8x64xf32>
    %100 = vector.extract_strided_slice %97 {offsets = [0, 0], sizes = [8, 64], strides = [1, 1]} : vector<8x192xf32> to vector<8x64xf32>
    %101 = vector.extract_strided_slice %97 {offsets = [0, 64], sizes = [8, 64], strides = [1, 1]} : vector<8x192xf32> to vector<8x64xf32>
    %102 = vector.extract_strided_slice %97 {offsets = [0, 128], sizes = [8, 64], strides = [1, 1]} : vector<8x192xf32> to vector<8x64xf32>
    %103 = arith.mulf %101, %84 : vector<8x64xf32>
    %104 = arith.mulf %100, %99 : vector<8x64xf32>
    %105 = arith.addf %103, %104 : vector<8x64xf32>
    %106 = math.tanh %105 : vector<8x64xf32>
    %107 = arith.mulf %102, %106 : vector<8x64xf32>
    %c5_i32 = arith.constant 5 : i32
    %108 = arith.index_cast %c5_i32 : i32 to index
    %c0_22 = arith.constant 0 : index
    %c0_23 = arith.constant 0 : index
    %109 = vector.load %arg1[%108, %c0_22, %c0_23] : memref<8x8x256xf32, #tpu.memory_space<vmem>>, vector<1x8x256xf32>
    %110 = vector.shape_cast %109 : vector<1x8x256xf32> to vector<8x256xf32>
    %cst_24 = arith.constant dense<0.000000e+00> : vector<8x256xf32>
    %111 = tpu.matmul %107, %0, %cst_24 {dimension_numbers = #tpu.dot_dimension_numbers<[1], [0], [0], [1], [0, 0, 1, 1], [], []>} : vector<8x64xf32>, vector<64x256xf32>, vector<8x256xf32> -> vector<8x256xf32>
    %112 = arith.addf %110, %111 : vector<8x256xf32>
    %113 = vector.extract_strided_slice %112 {offsets = [0, 0], sizes = [8, 192], strides = [1, 1]} : vector<8x256xf32> to vector<8x192xf32>
    %114 = arith.negf %113 : vector<8x192xf32>
    %115 = math.exp %114 : vector<8x192xf32>
    %cst_25 = arith.constant 1.000000e+00 : f32
    %116 = vector.broadcast %cst_25 : f32 to vector<8x192xf32>
    %117 = arith.addf %116, %115 : vector<8x192xf32>
    %118 = arith.divf %116, %117 : vector<8x192xf32>
    %119 = vector.extract_strided_slice %112 {offsets = [0, 192], sizes = [8, 64], strides = [1, 1]} : vector<8x256xf32> to vector<8x64xf32>
    %120 = math.tanh %119 : vector<8x64xf32>
    %121 = vector.extract_strided_slice %118 {offsets = [0, 0], sizes = [8, 64], strides = [1, 1]} : vector<8x192xf32> to vector<8x64xf32>
    %122 = vector.extract_strided_slice %118 {offsets = [0, 64], sizes = [8, 64], strides = [1, 1]} : vector<8x192xf32> to vector<8x64xf32>
    %123 = vector.extract_strided_slice %118 {offsets = [0, 128], sizes = [8, 64], strides = [1, 1]} : vector<8x192xf32> to vector<8x64xf32>
    %124 = arith.mulf %122, %105 : vector<8x64xf32>
    %125 = arith.mulf %121, %120 : vector<8x64xf32>
    %126 = arith.addf %124, %125 : vector<8x64xf32>
    %127 = math.tanh %126 : vector<8x64xf32>
    %128 = arith.mulf %123, %127 : vector<8x64xf32>
    %c6_i32 = arith.constant 6 : i32
    %129 = arith.index_cast %c6_i32 : i32 to index
    %c0_26 = arith.constant 0 : index
    %c0_27 = arith.constant 0 : index
    %130 = vector.load %arg1[%129, %c0_26, %c0_27] : memref<8x8x256xf32, #tpu.memory_space<vmem>>, vector<1x8x256xf32>
    %131 = vector.shape_cast %130 : vector<1x8x256xf32> to vector<8x256xf32>
    %cst_28 = arith.constant dense<0.000000e+00> : vector<8x256xf32>
    %132 = tpu.matmul %128, %0, %cst_28 {dimension_numbers = #tpu.dot_dimension_numbers<[1], [0], [0], [1], [0, 0, 1, 1], [], []>} : vector<8x64xf32>, vector<64x256xf32>, vector<8x256xf32> -> vector<8x256xf32>
    %133 = arith.addf %131, %132 : vector<8x256xf32>
    %134 = vector.extract_strided_slice %133 {offsets = [0, 0], sizes = [8, 192], strides = [1, 1]} : vector<8x256xf32> to vector<8x192xf32>
    %135 = arith.negf %134 : vector<8x192xf32>
    %136 = math.exp %135 : vector<8x192xf32>
    %cst_29 = arith.constant 1.000000e+00 : f32
    %137 = vector.broadcast %cst_29 : f32 to vector<8x192xf32>
    %138 = arith.addf %137, %136 : vector<8x192xf32>
    %139 = arith.divf %137, %138 : vector<8x192xf32>
    %140 = vector.extract_strided_slice %133 {offsets = [0, 192], sizes = [8, 64], strides = [1, 1]} : vector<8x256xf32> to vector<8x64xf32>
    %141 = math.tanh %140 : vector<8x64xf32>
    %142 = vector.extract_strided_slice %139 {offsets = [0, 0], sizes = [8, 64], strides = [1, 1]} : vector<8x192xf32> to vector<8x64xf32>
    %143 = vector.extract_strided_slice %139 {offsets = [0, 64], sizes = [8, 64], strides = [1, 1]} : vector<8x192xf32> to vector<8x64xf32>
    %144 = vector.extract_strided_slice %139 {offsets = [0, 128], sizes = [8, 64], strides = [1, 1]} : vector<8x192xf32> to vector<8x64xf32>
    %145 = arith.mulf %143, %126 : vector<8x64xf32>
    %146 = arith.mulf %142, %141 : vector<8x64xf32>
    %147 = arith.addf %145, %146 : vector<8x64xf32>
    %148 = math.tanh %147 : vector<8x64xf32>
    %149 = arith.mulf %144, %148 : vector<8x64xf32>
    %c7_i32 = arith.constant 7 : i32
    %150 = arith.index_cast %c7_i32 : i32 to index
    %c0_30 = arith.constant 0 : index
    %c0_31 = arith.constant 0 : index
    %151 = vector.load %arg1[%150, %c0_30, %c0_31] : memref<8x8x256xf32, #tpu.memory_space<vmem>>, vector<1x8x256xf32>
    %152 = vector.shape_cast %151 : vector<1x8x256xf32> to vector<8x256xf32>
    %cst_32 = arith.constant dense<0.000000e+00> : vector<8x256xf32>
    %153 = tpu.matmul %149, %0, %cst_32 {dimension_numbers = #tpu.dot_dimension_numbers<[1], [0], [0], [1], [0, 0, 1, 1], [], []>} : vector<8x64xf32>, vector<64x256xf32>, vector<8x256xf32> -> vector<8x256xf32>
    %154 = arith.addf %152, %153 : vector<8x256xf32>
    %155 = vector.extract_strided_slice %154 {offsets = [0, 0], sizes = [8, 192], strides = [1, 1]} : vector<8x256xf32> to vector<8x192xf32>
    %156 = arith.negf %155 : vector<8x192xf32>
    %157 = math.exp %156 : vector<8x192xf32>
    %cst_33 = arith.constant 1.000000e+00 : f32
    %158 = vector.broadcast %cst_33 : f32 to vector<8x192xf32>
    %159 = arith.addf %158, %157 : vector<8x192xf32>
    %160 = arith.divf %158, %159 : vector<8x192xf32>
    %161 = vector.extract_strided_slice %154 {offsets = [0, 192], sizes = [8, 64], strides = [1, 1]} : vector<8x256xf32> to vector<8x64xf32>
    %162 = math.tanh %161 : vector<8x64xf32>
    %163 = vector.extract_strided_slice %160 {offsets = [0, 0], sizes = [8, 64], strides = [1, 1]} : vector<8x192xf32> to vector<8x64xf32>
    %164 = vector.extract_strided_slice %160 {offsets = [0, 64], sizes = [8, 64], strides = [1, 1]} : vector<8x192xf32> to vector<8x64xf32>
    %165 = vector.extract_strided_slice %160 {offsets = [0, 128], sizes = [8, 64], strides = [1, 1]} : vector<8x192xf32> to vector<8x64xf32>
    %166 = arith.mulf %164, %147 : vector<8x64xf32>
    %167 = arith.mulf %163, %162 : vector<8x64xf32>
    %168 = arith.addf %166, %167 : vector<8x64xf32>
    %169 = math.tanh %168 : vector<8x64xf32>
    %170 = arith.mulf %165, %169 : vector<8x64xf32>
    %c8_i32 = arith.constant 8 : i32
    %c0_34 = arith.constant 0 : index
    %c0_35 = arith.constant 0 : index
    %171 = vector.load %arg4[%c0_34, %c0_35] : memref<8x32xf32, #tpu.memory_space<vmem>>, vector<1x32xf32>
    %c1 = arith.constant 1 : index
    %c0_36 = arith.constant 0 : index
    %172 = vector.load %arg4[%c1, %c0_36] : memref<8x32xf32, #tpu.memory_space<vmem>>, vector<1x32xf32>
    %c2 = arith.constant 2 : index
    %c0_37 = arith.constant 0 : index
    %173 = vector.load %arg4[%c2, %c0_37] : memref<8x32xf32, #tpu.memory_space<vmem>>, vector<1x32xf32>
    %c3 = arith.constant 3 : index
    %c0_38 = arith.constant 0 : index
    %174 = vector.load %arg4[%c3, %c0_38] : memref<8x32xf32, #tpu.memory_space<vmem>>, vector<1x32xf32>
    %c4 = arith.constant 4 : index
    %c0_39 = arith.constant 0 : index
    %175 = vector.load %arg4[%c4, %c0_39] : memref<8x32xf32, #tpu.memory_space<vmem>>, vector<1x1xf32>
    %c0_40 = arith.constant 0 : index
    %c0_41 = arith.constant 0 : index
    %176 = vector.load %arg3[%c0_40, %c0_41] : memref<64x32xf32, #tpu.memory_space<vmem>>, vector<64x32xf32>
    %cst_42 = arith.constant dense<0.000000e+00> : vector<8x32xf32>
    %177 = tpu.matmul %170, %176, %cst_42 {dimension_numbers = #tpu.dot_dimension_numbers<[1], [0], [0], [1], [0, 0, 1, 1], [], []>} : vector<8x64xf32>, vector<64x32xf32>, vector<8x32xf32> -> vector<8x32xf32>
    %178 = vector.broadcast %171 : vector<1x32xf32> to vector<8x32xf32>
    %179 = arith.addf %177, %178 : vector<8x32xf32>
    %cst_43 = arith.constant 0.000000e+00 : f32
    %180 = vector.broadcast %cst_43 : f32 to vector<8x32xf32>
    %181 = arith.maximumf %179, %180 : vector<8x32xf32>
    %cst_44 = arith.constant dense<0.000000e+00> : vector<8xf32>
    %182 = vector.multi_reduction <add>, %181, %cst_44 [1] : vector<8x32xf32> to vector<8xf32>
    %183 = vector.shape_cast %182 : vector<8xf32> to vector<8x1xf32>
    %cst_45 = arith.constant 3.200000e+01 : f32
    %184 = vector.broadcast %cst_45 : f32 to vector<8x1xf32>
    %185 = arith.divf %183, %184 : vector<8x1xf32>
    %186 = vector.broadcast %185 : vector<8x1xf32> to vector<8x32xf32>
    %187 = arith.subf %181, %186 : vector<8x32xf32>
    %188 = arith.mulf %187, %187 : vector<8x32xf32>
    %cst_46 = arith.constant dense<0.000000e+00> : vector<8xf32>
    %189 = vector.multi_reduction <add>, %188, %cst_46 [1] : vector<8x32xf32> to vector<8xf32>
    %190 = vector.shape_cast %189 : vector<8xf32> to vector<8x1xf32>
    %cst_47 = arith.constant 3.200000e+01 : f32
    %191 = vector.broadcast %cst_47 : f32 to vector<8x1xf32>
    %192 = arith.divf %190, %191 : vector<8x1xf32>
    %193 = vector.broadcast %185 : vector<8x1xf32> to vector<8x32xf32>
    %194 = arith.subf %181, %193 : vector<8x32xf32>
    %cst_48 = arith.constant 9.99999974E-6 : f32
    %195 = vector.broadcast %cst_48 : f32 to vector<8x1xf32>
    %196 = arith.addf %192, %195 : vector<8x1xf32>
    %197 = math.rsqrt %196 : vector<8x1xf32>
    %198 = vector.broadcast %197 : vector<8x1xf32> to vector<8x32xf32>
    %199 = arith.mulf %194, %198 : vector<8x32xf32>
    %200 = vector.broadcast %172 : vector<1x32xf32> to vector<8x32xf32>
    %201 = arith.mulf %199, %200 : vector<8x32xf32>
    %202 = vector.broadcast %173 : vector<1x32xf32> to vector<8x32xf32>
    %203 = arith.addf %201, %202 : vector<8x32xf32>
    %cst_49 = arith.constant dense<0.000000e+00> : vector<1x8xf32>
    %204 = tpu.matmul %174, %203, %cst_49 {dimension_numbers = #tpu.dot_dimension_numbers<[1], [1], [0], [0], [0, 0, 1, 0], [], []>} : vector<1x32xf32>, vector<8x32xf32>, vector<1x8xf32> -> vector<1x8xf32>
    %205 = vector.broadcast %175 : vector<1x1xf32> to vector<1x8xf32>
    %206 = arith.addf %204, %205 : vector<1x8xf32>
    %c0_50 = arith.constant 0 : index
    %c0_51 = arith.constant 0 : index
    %207 = vector.load %arg5[%c0_50, %c0_51] : memref<1x8xf32, #tpu.memory_space<vmem>>, vector<1x8xf32>
    tpu.vector_store %arg5[%c0_50, %c0_51], %206 {strides = array<i32>} : memref<1x8xf32, #tpu.memory_space<vmem>>, vector<1x8xf32>,
    return
  }
  func.func @transform_0(%arg0: i32) -> (i32, i32, i32) {
    %c0_i32 = arith.constant 0 : i32
    %c0_i32_0 = arith.constant 0 : i32
    %c0_i32_1 = arith.constant 0 : i32
    return %c0_i32, %arg0, %c0_i32_0 : i32, i32, i32
  }
  func.func @transform_1(%arg0: i32) -> (i32, i32) {
    %c0_i32 = arith.constant 0 : i32
    %c0_i32_0 = arith.constant 0 : i32
    %c0_i32_1 = arith.constant 0 : i32
    return %c0_i32, %c0_i32_0 : i32, i32
  }
  func.func @transform_2(%arg0: i32) -> (i32, i32) {
    %c0_i32 = arith.constant 0 : i32
    %c0_i32_0 = arith.constant 0 : i32
    %c0_i32_1 = arith.constant 0 : i32
    return %c0_i32, %c0_i32_0 : i32, i32
  }
  func.func @transform_3(%arg0: i32) -> (i32, i32) {
    %c0_i32 = arith.constant 0 : i32
    %c0_i32_0 = arith.constant 0 : i32
    %c0_i32_1 = arith.constant 0 : i32
    return %c0_i32, %c0_i32_0 : i32, i32
  }
  func.func @transform_4(%arg0: i32) -> (i32, i32) {
    %c0_i32 = arith.constant 0 : i32
    %c0_i32_0 = arith.constant 0 : i32
    return %arg0, %c0_i32 : i32, i32
  }
}

</mosaic_0001>

<llo_original>
// kernel: critic_forward.1
$region0: #{critic_forward.1}
  #allocation0 [shape = 'u32[]', space=smem, size = 0x4, offset = 0x4, fixed_abs, tag = 'smem constant byte address 0x4 - core index']
  #allocation1 [shape = 'u32[72,128]{1,0:T(1,128)}', space=vmem, size = 0x9000, scoped, tag = 'internal scratch']
  %s0 = inlined_call_operand.vmem [shape: f32[8,8,256], index: 0, kind: input, shape index: {}]
  %s1 = inlined_call_operand.vmem [shape: f32[64,256], index: 1, kind: input, shape index: {}]
  %s2 = inlined_call_operand.vmem [shape: f32[64,32], index: 2, kind: input, shape index: {}]
  %s3 = inlined_call_operand.vmem [shape: f32[8,32], index: 3, kind: input, shape index: {}]
  %s4 = inlined_call_operand.vmem [shape: f32[1,8], index: 4, kind: output, shape index: {}]
  %s5 = sld [smem:[#allocation0]]
  $region26: #{critic_forward.1} parent=0
    _
  %s7 = ssub.s32 1, %s5
  %s8 = scalar_select 0, %s7, %s5
  // Predicated region
  $region2: #{critic_forward.1} parent=0 // pred_check
    _
  $region3: #{critic_forward.1} parent=0 // pred_check_branch
    %10 = sbr.rel (0) target = $region5
  $region4: #{critic_forward.1} parent=0 // pred_region
    _
  $region5: #{critic_forward.1} parent=0 // pred_fallthru
    _
  // Predicated region
  $region6: #{critic_forward.1} parent=0 // pred_check
    _
  $region7: #{critic_forward.1} parent=0 // pred_check_branch
    %12 = sbr.rel (0) target = $region9
  $region8: #{critic_forward.1} parent=0 // pred_region
    _
  $region9: #{critic_forward.1} parent=0 // pred_fallthru
    _
  // Predicated region
  $region10: #{critic_forward.1} parent=0 // pred_check
    _
  $region11: #{critic_forward.1} parent=0 // pred_check_branch
    %14 = sbr.rel (0) target = $region13
  $region12: #{critic_forward.1} parent=0 // pred_region
    _
  $region13: #{critic_forward.1} parent=0 // pred_fallthru
    _
  // Predicated region
  $region14: #{critic_forward.1} parent=0 // pred_check
    _
  $region15: #{critic_forward.1} parent=0 // pred_check_branch
    %16 = sbr.rel (0) target = $region17
  $region16: #{critic_forward.1} parent=0 // pred_region
    _
  $region17: #{critic_forward.1} parent=0 // pred_fallthru
    _
  %v17 = vld [vmem:[%s1] sm:$0xff]
  %v18 = vld [vmem:[%s1 + $0x8] sm:$0xff]
  %v19 = vld [vmem:[%s1 + $0x10] sm:$0xff]
  %v20 = vld [vmem:[%s1 + $0x18] sm:$0xff]
  %v21 = vld [vmem:[%s1 + $0x20] sm:$0xff]
  %v22 = vld [vmem:[%s1 + $0x28] sm:$0xff]
  %v23 = vld [vmem:[%s1 + $0x30] sm:$0xff]
  %v24 = vld [vmem:[%s1 + $0x38] sm:$0xff]
  %v25 = vld [vmem:[%s1 + $0x40] sm:$0xff]
  %v26 = vld [vmem:[%s1 + $0x48] sm:$0xff]
  %v27 = vld [vmem:[%s1 + $0x50] sm:$0xff]
  %v28 = vld [vmem:[%s1 + $0x58] sm:$0xff]
  %v29 = vld [vmem:[%s1 + $0x60] sm:$0xff]
  %v30 = vld [vmem:[%s1 + $0x68] sm:$0xff]
  %v31 = vld [vmem:[%s1 + $0x70] sm:$0xff]
  %v32 = vld [vmem:[%s1 + $0x78] sm:$0xff]
  %v33 = vld [vmem:[%s0] sm:$0xff]
  %v34 = vld [vmem:[%s0 + $0x8] sm:$0xff]
  %vm35 = vcmask 523264
  %v37 = vsel %vm35, 0.0, 0
  %39 = vmatpush.msra.mxu0 0.0
  %40 = vmatpush.msra.mxu0 0.0
  %41 = vmatpush.msra.mxu0 0.0
  %42 = vmatpush.msra.mxu0 0.0
  %43 = vmatpush.msra.mxu0 0.0
  %44 = vmatpush.msra.mxu0 0.0
  %45 = vmatpush.msra.mxu0 0.0
  %46 = vmatpush.msra.mxu0 0.0
  %47 = vmatpush.msra.mxu0 %v31
  %48 = vmatpush.msra.mxu0 %v29
  %49 = vmatpush.msra.mxu0 %v27
  %50 = vmatpush.msra.mxu0 %v25
  %51 = vmatpush.msra.mxu0 %v23
  %52 = vmatpush.msra.mxu0 %v21
  %53 = vmatpush.msra.mxu0 %v19
  %54 = vmatpush.msra.mxu0 %v17
  %55 = vmatmul.f32.gmra.mxu0 %v37
  %v56 = vpop.f32.mrf.mxu0
  %v57 = vadd.f32 0.0, %v56
  %58 = vdwg.mxu0
  %59 = vmatpush.msra.mxu0 0.0
  %60 = vmatpush.msra.mxu0 0.0
  %61 = vmatpush.msra.mxu0 0.0
  %62 = vmatpush.msra.mxu0 0.0
  %63 = vmatpush.msra.mxu0 0.0
  %64 = vmatpush.msra.mxu0 0.0
  %65 = vmatpush.msra.mxu0 0.0
  %66 = vmatpush.msra.mxu0 0.0
  %67 = vmatpush.msra.mxu0 %v32
  %68 = vmatpush.msra.mxu0 %v30
  %69 = vmatpush.msra.mxu0 %v28
  %70 = vmatpush.msra.mxu0 %v26
  %71 = vmatpush.msra.mxu0 %v24
  %72 = vmatpush.msra.mxu0 %v22
  %73 = vmatpush.msra.mxu0 %v20
  %74 = vmatpush.msra.mxu0 %v18
  %75 = vmatmul.f32.gmra.mxu0 %v37
  %v76 = vpop.f32.mrf.mxu0
  %v77 = vadd.f32 0.0, %v76
  %78 = vdwg.mxu0
  %v79 = vadd.f32 %v33, %v57
  %v80 = vadd.f32 %v34, %v77
  %v81 = vxor.u32 %v79, 2147483648
  %v82 = vxor.u32 %v80, 2147483648
  %v83 = vmul.f32 %v81, 1.442695
  %v84 = vpow.pop %v83
  %v85 = vmul.f32 %v82, 1.442695
  %v86 = vpow.pop %v85
  %v87 = vadd.f32 %v84, 1.0
  %v88 = vadd.f32 %v86, 1.0
  %v89 = vrcp.pop %v87
  %v90 = vmul.f32 %v87, %v89
  %v91 = vsub.f32 1.0, %v90
  %v92 = vmul.f32 %v89, %v91
  %v93 = vadd.f32 %v89, %v92
  %vm94 = vweird.f32 %v87
  %vm95 = vweird.f32 %v89
  %vm96 = vmor %vm94, %vm95
  %v97 = vsel %vm96, %v89, %v93
  %v98 = vand.u32 2147483647, %v87
  %vm99 = vcmp.eq.f32.partialorder %v98, 8.507059e+37
  %v100 = vand.u32 %v87, 2147483648
  %v101 = vor.u32 1.1754944e-38, %v100
  %v102 = vsel %vm99, %v101, %v97
  %v103 = vmul.f32 1.0, %v102
  %v104 = vrcp.pop %v88
  %v105 = vmul.f32 %v88, %v104
  %v106 = vsub.f32 1.0, %v105
  %v107 = vmul.f32 %v104, %v106
  %v108 = vadd.f32 %v104, %v107
  %vm109 = vweird.f32 %v88
  %vm110 = vweird.f32 %v104
  %vm111 = vmor %vm109, %vm110
  %v112 = vsel %vm111, %v104, %v108
  %v113 = vand.u32 2147483647, %v88
  %vm114 = vcmp.eq.f32.partialorder %v113, 8.507059e+37
  %v115 = vand.u32 %v88, 2147483648
  %v116 = vor.u32 1.1754944e-38, %v115
  %v117 = vsel %vm114, %v116, %v112
  %v118 = vmul.f32 1.0, %v117
  %v119 = vtanh.pop %v80
  %v120 = vmul.f32 %v103, 0.0
  %122 = vrot.lane.b32.xlu0 %v119, 64
  %v123 = vpop.permute.xlu0 %122
  %v125 = vmul.f32 %v103, %v123
  %127 = vrot.lane.b32.xlu0 %v125, 64
  %v128 = vpop.permute.xlu0 %127
  %v130 = vadd.f32 %v120, %v128
  %v131 = vtanh.pop %v130
  %133 = vrot.lane.b32.xlu0 %v131, 64
  %v134 = vpop.permute.xlu0 %133
  %v136 = vmul.f32 %v118, %v134
  %s137 = scalar_lea.vmem %s0, 16
  %v138 = vld [vmem:[%s137] sm:$0xff]
  %v139 = vld [vmem:[%s137 + $0x8] sm:$0xff]
  %v141 = vsel %vm35, %v136, 0
  %143 = vmatpush.msra.mxu0 0.0
  %144 = vmatpush.msra.mxu0 0.0
  %145 = vmatpush.msra.mxu0 0.0
  %146 = vmatpush.msra.mxu0 0.0
  %147 = vmatpush.msra.mxu0 0.0
  %148 = vmatpush.msra.mxu0 0.0
  %149 = vmatpush.msra.mxu0 0.0
  %150 = vmatpush.msra.mxu0 0.0
  %151 = vmatpush.msra.mxu0 %v31
  %152 = vmatpush.msra.mxu0 %v29
  %153 = vmatpush.msra.mxu0 %v27
  %154 = vmatpush.msra.mxu0 %v25
  %155 = vmatpush.msra.mxu0 %v23
  %156 = vmatpush.msra.mxu0 %v21
  %157 = vmatpush.msra.mxu0 %v19
  %158 = vmatpush.msra.mxu0 %v17
  %159 = vmatmul.f32.gmra.mxu0 %v141
  %v160 = vpop.f32.mrf.mxu0
  %v161 = vadd.f32 0.0, %v160
  %162 = vdwg.mxu0
  %163 = vmatpush.msra.mxu0 0.0
  %164 = vmatpush.msra.mxu0 0.0
  %165 = vmatpush.msra.mxu0 0.0
  %166 = vmatpush.msra.mxu0 0.0
  %167 = vmatpush.msra.mxu0 0.0
  %168 = vmatpush.msra.mxu0 0.0
  %169 = vmatpush.msra.mxu0 0.0
  %170 = vmatpush.msra.mxu0 0.0
  %171 = vmatpush.msra.mxu0 %v32
  %172 = vmatpush.msra.mxu0 %v30
  %173 = vmatpush.msra.mxu0 %v28
  %174 = vmatpush.msra.mxu0 %v26
  %175 = vmatpush.msra.mxu0 %v24
  %176 = vmatpush.msra.mxu0 %v22
  %177 = vmatpush.msra.mxu0 %v20
  %178 = vmatpush.msra.mxu0 %v18
  %179 = vmatmul.f32.gmra.mxu0 %v141
  %v180 = vpop.f32.mrf.mxu0
  %v181 = vadd.f32 0.0, %v180
  %182 = vdwg.mxu0
  %v183 = vadd.f32 %v138, %v161
  %v184 = vadd.f32 %v139, %v181
  %v185 = vxor.u32 %v183, 2147483648
  %v186 = vxor.u32 %v184, 2147483648
  %v187 = vmul.f32 %v185, 1.442695
  %v188 = vpow.pop %v187
  %v189 = vmul.f32 %v186, 1.442695
  %v190 = vpow.pop %v189
  %v191 = vadd.f32 %v188, 1.0
  %v192 = vadd.f32 %v190, 1.0
  %v193 = vrcp.pop %v191
  %v194 = vmul.f32 %v191, %v193
  %v195 = vsub.f32 1.0, %v194
  %v196 = vmul.f32 %v193, %v195
  %v197 = vadd.f32 %v193, %v196
  %vm198 = vweird.f32 %v191
  %vm199 = vweird.f32 %v193
  %vm200 = vmor %vm198, %vm199
  %v201 = vsel %vm200, %v193, %v197
  %v202 = vand.u32 2147483647, %v191
  %vm203 = vcmp.eq.f32.partialorder %v202, 8.507059e+37
  %v204 = vand.u32 %v191, 2147483648
  %v205 = vor.u32 1.1754944e-38, %v204
  %v206 = vsel %vm203, %v205, %v201
  %v207 = vmul.f32 1.0, %v206
  %v208 = vrcp.pop %v192
  %v209 = vmul.f32 %v192, %v208
  %v210 = vsub.f32 1.0, %v209
  %v211 = vmul.f32 %v208, %v210
  %v212 = vadd.f32 %v208, %v211
  %vm213 = vweird.f32 %v192
  %vm214 = vweird.f32 %v208
  %vm215 = vmor %vm213, %vm214
  %v216 = vsel %vm215, %v208, %v212
  %v217 = vand.u32 2147483647, %v192
  %vm218 = vcmp.eq.f32.partialorder %v217, 8.507059e+37
  %v219 = vand.u32 %v192, 2147483648
  %v220 = vor.u32 1.1754944e-38, %v219
  %v221 = vsel %vm218, %v220, %v216
  %v222 = vmul.f32 1.0, %v221
  %v223 = vtanh.pop %v184
  %v224 = vmul.f32 %v207, %v130
  %226 = vrot.lane.b32.xlu0 %v223, 64
  %v227 = vpop.permute.xlu0 %226
  %v229 = vmul.f32 %v207, %v227
  %231 = vrot.lane.b32.xlu0 %v229, 64
  %v232 = vpop.permute.xlu0 %231
  %v234 = vadd.f32 %v224, %v232
  %v235 = vtanh.pop %v234
  %237 = vrot.lane.b32.xlu0 %v235, 64
  %v238 = vpop.permute.xlu0 %237
  %v240 = vmul.f32 %v222, %v238
  %s241 = scalar_lea.vmem %s0, 32
  %v242 = vld [vmem:[%s241] sm:$0xff]
  %v243 = vld [vmem:[%s241 + $0x8] sm:$0xff]
  %v245 = vsel %vm35, %v240, 0
  %247 = vmatpush.msra.mxu0 0.0
  %248 = vmatpush.msra.mxu0 0.0
  %249 = vmatpush.msra.mxu0 0.0
  %250 = vmatpush.msra.mxu0 0.0
  %251 = vmatpush.msra.mxu0 0.0
  %252 = vmatpush.msra.mxu0 0.0
  %253 = vmatpush.msra.mxu0 0.0
  %254 = vmatpush.msra.mxu0 0.0
  %255 = vmatpush.msra.mxu0 %v31
  %256 = vmatpush.msra.mxu0 %v29
  %257 = vmatpush.msra.mxu0 %v27
  %258 = vmatpush.msra.mxu0 %v25
  %259 = vmatpush.msra.mxu0 %v23
  %260 = vmatpush.msra.mxu0 %v21
  %261 = vmatpush.msra.mxu0 %v19
  %262 = vmatpush.msra.mxu0 %v17
  %263 = vmatmul.f32.gmra.mxu0 %v245
  %v264 = vpop.f32.mrf.mxu0
  %v265 = vadd.f32 0.0, %v264
  %266 = vdwg.mxu0
  %267 = vmatpush.msra.mxu0 0.0
  %268 = vmatpush.msra.mxu0 0.0
  %269 = vmatpush.msra.mxu0 0.0
  %270 = vmatpush.msra.mxu0 0.0
  %271 = vmatpush.msra.mxu0 0.0
  %272 = vmatpush.msra.mxu0 0.0
  %273 = vmatpush.msra.mxu0 0.0
  %274 = vmatpush.msra.mxu0 0.0
  %275 = vmatpush.msra.mxu0 %v32
  %276 = vmatpush.msra.mxu0 %v30
  %277 = vmatpush.msra.mxu0 %v28
  %278 = vmatpush.msra.mxu0 %v26
  %279 = vmatpush.msra.mxu0 %v24
  %280 = vmatpush.msra.mxu0 %v22
  %281 = vmatpush.msra.mxu0 %v20
  %282 = vmatpush.msra.mxu0 %v18
  %283 = vmatmul.f32.gmra.mxu0 %v245
  %v284 = vpop.f32.mrf.mxu0
  %v285 = vadd.f32 0.0, %v284
  %286 = vdwg.mxu0
  %v287 = vadd.f32 %v242, %v265
  %v288 = vadd.f32 %v243, %v285
  %v289 = vxor.u32 %v287, 2147483648
  %v290 = vxor.u32 %v288, 2147483648
  %v291 = vmul.f32 %v289, 1.442695
  %v292 = vpow.pop %v291
  %v293 = vmul.f32 %v290, 1.442695
  %v294 = vpow.pop %v293
  %v295 = vadd.f32 %v292, 1.0
  %v296 = vadd.f32 %v294, 1.0
  %v297 = vrcp.pop %v295
  %v298 = vmul.f32 %v295, %v297
  %v299 = vsub.f32 1.0, %v298
  %v300 = vmul.f32 %v297, %v299
  %v301 = vadd.f32 %v297, %v300
  %vm302 = vweird.f32 %v295
  %vm303 = vweird.f32 %v297
  %vm304 = vmor %vm302, %vm303
  %v305 = vsel %vm304, %v297, %v301
  %v306 = vand.u32 2147483647, %v295
  %vm307 = vcmp.eq.f32.partialorder %v306, 8.507059e+37
  %v308 = vand.u32 %v295, 2147483648
  %v309 = vor.u32 1.1754944e-38, %v308
  %v310 = vsel %vm307, %v309, %v305
  %v311 = vmul.f32 1.0, %v310
  %v312 = vrcp.pop %v296
  %v313 = vmul.f32 %v296, %v312
  %v314 = vsub.f32 1.0, %v313
  %v315 = vmul.f32 %v312, %v314
  %v316 = vadd.f32 %v312, %v315
  %vm317 = vweird.f32 %v296
  %vm318 = vweird.f32 %v312
  %vm319 = vmor %vm317, %vm318
  %v320 = vsel %vm319, %v312, %v316
  %v321 = vand.u32 2147483647, %v296
  %vm322 = vcmp.eq.f32.partialorder %v321, 8.507059e+37
  %v323 = vand.u32 %v296, 2147483648
  %v324 = vor.u32 1.1754944e-38, %v323
  %v325 = vsel %vm322, %v324, %v320
  %v326 = vmul.f32 1.0, %v325
  %v327 = vtanh.pop %v288
  %v328 = vmul.f32 %v311, %v234
  %330 = vrot.lane.b32.xlu0 %v327, 64
  %v331 = vpop.permute.xlu0 %330
  %v333 = vmul.f32 %v311, %v331
  %335 = vrot.lane.b32.xlu0 %v333, 64
  %v336 = vpop.permute.xlu0 %335
  %v338 = vadd.f32 %v328, %v336
  %v339 = vtanh.pop %v338
  %341 = vrot.lane.b32.xlu0 %v339, 64
  %v342 = vpop.permute.xlu0 %341
  %v344 = vmul.f32 %v326, %v342
  %s345 = scalar_lea.vmem %s0, 48
  %v346 = vld [vmem:[%s345] sm:$0xff]
  %v347 = vld [vmem:[%s345 + $0x8] sm:$0xff]
  %v349 = vsel %vm35, %v344, 0
  %351 = vmatpush.msra.mxu0 0.0
  %352 = vmatpush.msra.mxu0 0.0
  %353 = vmatpush.msra.mxu0 0.0
  %354 = vmatpush.msra.mxu0 0.0
  %355 = vmatpush.msra.mxu0 0.0
  %356 = vmatpush.msra.mxu0 0.0
  %357 = vmatpush.msra.mxu0 0.0
  %358 = vmatpush.msra.mxu0 0.0
  %359 = vmatpush.msra.mxu0 %v31
  %360 = vmatpush.msra.mxu0 %v29
  %361 = vmatpush.msra.mxu0 %v27
  %362 = vmatpush.msra.mxu0 %v25
  %363 = vmatpush.msra.mxu0 %v23
  %364 = vmatpush.msra.mxu0 %v21
  %365 = vmatpush.msra.mxu0 %v19
  %366 = vmatpush.msra.mxu0 %v17
  %367 = vmatmul.f32.gmra.mxu0 %v349
  %v368 = vpop.f32.mrf.mxu0
  %v369 = vadd.f32 0.0, %v368
  %370 = vdwg.mxu0
  %371 = vmatpush.msra.mxu0 0.0
  %372 = vmatpush.msra.mxu0 0.0
  %373 = vmatpush.msra.mxu0 0.0
  %374 = vmatpush.msra.mxu0 0.0
  %375 = vmatpush.msra.mxu0 0.0
  %376 = vmatpush.msra.mxu0 0.0
  %377 = vmatpush.msra.mxu0 0.0
  %378 = vmatpush.msra.mxu0 0.0
  %379 = vmatpush.msra.mxu0 %v32
  %380 = vmatpush.msra.mxu0 %v30
  %381 = vmatpush.msra.mxu0 %v28
  %382 = vmatpush.msra.mxu0 %v26
  %383 = vmatpush.msra.mxu0 %v24
  %384 = vmatpush.msra.mxu0 %v22
  %385 = vmatpush.msra.mxu0 %v20
  %386 = vmatpush.msra.mxu0 %v18
  %387 = vmatmul.f32.gmra.mxu0 %v349
  %v388 = vpop.f32.mrf.mxu0
  %v389 = vadd.f32 0.0, %v388
  %390 = vdwg.mxu0
  %v391 = vadd.f32 %v346, %v369
  %v392 = vadd.f32 %v347, %v389
  %v393 = vxor.u32 %v391, 2147483648
  %v394 = vxor.u32 %v392, 2147483648
  %v395 = vmul.f32 %v393, 1.442695
  %v396 = vpow.pop %v395
  %v397 = vmul.f32 %v394, 1.442695
  %v398 = vpow.pop %v397
  %v399 = vadd.f32 %v396, 1.0
  %v400 = vadd.f32 %v398, 1.0
  %v401 = vrcp.pop %v399
  %v402 = vmul.f32 %v399, %v401
  %v403 = vsub.f32 1.0, %v402
  %v404 = vmul.f32 %v401, %v403
  %v405 = vadd.f32 %v401, %v404
  %vm406 = vweird.f32 %v399
  %vm407 = vweird.f32 %v401
  %vm408 = vmor %vm406, %vm407
  %v409 = vsel %vm408, %v401, %v405
  %v410 = vand.u32 2147483647, %v399
  %vm411 = vcmp.eq.f32.partialorder %v410, 8.507059e+37
  %v412 = vand.u32 %v399, 2147483648
  %v413 = vor.u32 1.1754944e-38, %v412
  %v414 = vsel %vm411, %v413, %v409
  %v415 = vmul.f32 1.0, %v414
  %v416 = vrcp.pop %v400
  %v417 = vmul.f32 %v400, %v416
  %v418 = vsub.f32 1.0, %v417
  %v419 = vmul.f32 %v416, %v418
  %v420 = vadd.f32 %v416, %v419
  %vm421 = vweird.f32 %v400
  %vm422 = vweird.f32 %v416
  %vm423 = vmor %vm421, %vm422
  %v424 = vsel %vm423, %v416, %v420
  %v425 = vand.u32 2147483647, %v400
  %vm426 = vcmp.eq.f32.partialorder %v425, 8.507059e+37
  %v427 = vand.u32 %v400, 2147483648
  %v428 = vor.u32 1.1754944e-38, %v427
  %v429 = vsel %vm426, %v428, %v424
  %v430 = vmul.f32 1.0, %v429
  %v431 = vtanh.pop %v392
  %v432 = vmul.f32 %v415, %v338
  %434 = vrot.lane.b32.xlu0 %v431, 64
  %v435 = vpop.permute.xlu0 %434
  %v437 = vmul.f32 %v415, %v435
  %439 = vrot.lane.b32.xlu0 %v437, 64
  %v440 = vpop.permute.xlu0 %439
  %v442 = vadd.f32 %v432, %v440
  %v443 = vtanh.pop %v442
  %445 = vrot.lane.b32.xlu0 %v443, 64
  %v446 = vpop.permute.xlu0 %445
  %v448 = vmul.f32 %v430, %v446
  %s449 = scalar_lea.vmem %s0, 64
  %v450 = vld [vmem:[%s449] sm:$0xff]
  %v451 = vld [vmem:[%s449 + $0x8] sm:$0xff]
  %v453 = vsel %vm35, %v448, 0
  %455 = vmatpush.msra.mxu0 0.0
  %456 = vmatpush.msra.mxu0 0.0
  %457 = vmatpush.msra.mxu0 0.0
  %458 = vmatpush.msra.mxu0 0.0
  %459 = vmatpush.msra.mxu0 0.0
  %460 = vmatpush.msra.mxu0 0.0
  %461 = vmatpush.msra.mxu0 0.0
  %462 = vmatpush.msra.mxu0 0.0
  %463 = vmatpush.msra.mxu0 %v31
  %464 = vmatpush.msra.mxu0 %v29
  %465 = vmatpush.msra.mxu0 %v27
  %466 = vmatpush.msra.mxu0 %v25
  %467 = vmatpush.msra.mxu0 %v23
  %468 = vmatpush.msra.mxu0 %v21
  %469 = vmatpush.msra.mxu0 %v19
  %470 = vmatpush.msra.mxu0 %v17
  %471 = vmatmul.f32.gmra.mxu0 %v453
  %v472 = vpop.f32.mrf.mxu0
  %v473 = vadd.f32 0.0, %v472
  %474 = vdwg.mxu0
  %475 = vmatpush.msra.mxu0 0.0
  %476 = vmatpush.msra.mxu0 0.0
  %477 = vmatpush.msra.mxu0 0.0
  %478 = vmatpush.msra.mxu0 0.0
  %479 = vmatpush.msra.mxu0 0.0
  %480 = vmatpush.msra.mxu0 0.0
  %481 = vmatpush.msra.mxu0 0.0
  %482 = vmatpush.msra.mxu0 0.0
  %483 = vmatpush.msra.mxu0 %v32
  %484 = vmatpush.msra.mxu0 %v30
  %485 = vmatpush.msra.mxu0 %v28
  %486 = vmatpush.msra.mxu0 %v26
  %487 = vmatpush.msra.mxu0 %v24
  %488 = vmatpush.msra.mxu0 %v22
  %489 = vmatpush.msra.mxu0 %v20
  %490 = vmatpush.msra.mxu0 %v18
  %491 = vmatmul.f32.gmra.mxu0 %v453
  %v492 = vpop.f32.mrf.mxu0
  %v493 = vadd.f32 0.0, %v492
  %494 = vdwg.mxu0
  %v495 = vadd.f32 %v450, %v473
  %v496 = vadd.f32 %v451, %v493
  %v497 = vxor.u32 %v495, 2147483648
  %v498 = vxor.u32 %v496, 2147483648
  %v499 = vmul.f32 %v497, 1.442695
  %v500 = vpow.pop %v499
  %v501 = vmul.f32 %v498, 1.442695
  %v502 = vpow.pop %v501
  %v503 = vadd.f32 %v500, 1.0
  %v504 = vadd.f32 %v502, 1.0
  %v505 = vrcp.pop %v503
  %v506 = vmul.f32 %v503, %v505
  %v507 = vsub.f32 1.0, %v506
  %v508 = vmul.f32 %v505, %v507
  %v509 = vadd.f32 %v505, %v508
  %vm510 = vweird.f32 %v503
  %vm511 = vweird.f32 %v505
  %vm512 = vmor %vm510, %vm511
  %v513 = vsel %vm512, %v505, %v509
  %v514 = vand.u32 2147483647, %v503
  %vm515 = vcmp.eq.f32.partialorder %v514, 8.507059e+37
  %v516 = vand.u32 %v503, 2147483648
  %v517 = vor.u32 1.1754944e-38, %v516
  %v518 = vsel %vm515, %v517, %v513
  %v519 = vmul.f32 1.0, %v518
  %v520 = vrcp.pop %v504
  %v521 = vmul.f32 %v504, %v520
  %v522 = vsub.f32 1.0, %v521
  %v523 = vmul.f32 %v520, %v522
  %v524 = vadd.f32 %v520, %v523
  %vm525 = vweird.f32 %v504
  %vm526 = vweird.f32 %v520
  %vm527 = vmor %vm525, %vm526
  %v528 = vsel %vm527, %v520, %v524
  %v529 = vand.u32 2147483647, %v504
  %vm530 = vcmp.eq.f32.partialorder %v529, 8.507059e+37
  %v531 = vand.u32 %v504, 2147483648
  %v532 = vor.u32 1.1754944e-38, %v531
  %v533 = vsel %vm530, %v532, %v528
  %v534 = vmul.f32 1.0, %v533
  %v535 = vtanh.pop %v496
  %v536 = vmul.f32 %v519, %v442
  %538 = vrot.lane.b32.xlu0 %v535, 64
  %v539 = vpop.permute.xlu0 %538
  %v541 = vmul.f32 %v519, %v539
  %543 = vrot.lane.b32.xlu0 %v541, 64
  %v544 = vpop.permute.xlu0 %543
  %v546 = vadd.f32 %v536, %v544
  %v547 = vtanh.pop %v546
  %549 = vrot.lane.b32.xlu0 %v547, 64
  %v550 = vpop.permute.xlu0 %549
  %v552 = vmul.f32 %v534, %v550
  %s553 = scalar_lea.vmem %s0, 80
  %v554 = vld [vmem:[%s553] sm:$0xff]
  %v555 = vld [vmem:[%s553 + $0x8] sm:$0xff]
  %v557 = vsel %vm35, %v552, 0
  %559 = vmatpush.msra.mxu0 0.0
  %560 = vmatpush.msra.mxu0 0.0
  %561 = vmatpush.msra.mxu0 0.0
  %562 = vmatpush.msra.mxu0 0.0
  %563 = vmatpush.msra.mxu0 0.0
  %564 = vmatpush.msra.mxu0 0.0
  %565 = vmatpush.msra.mxu0 0.0
  %566 = vmatpush.msra.mxu0 0.0
  %567 = vmatpush.msra.mxu0 %v31
  %568 = vmatpush.msra.mxu0 %v29
  %569 = vmatpush.msra.mxu0 %v27
  %570 = vmatpush.msra.mxu0 %v25
  %571 = vmatpush.msra.mxu0 %v23
  %572 = vmatpush.msra.mxu0 %v21
  %573 = vmatpush.msra.mxu0 %v19
  %574 = vmatpush.msra.mxu0 %v17
  %575 = vmatmul.f32.gmra.mxu0 %v557
  %v576 = vpop.f32.mrf.mxu0
  %v577 = vadd.f32 0.0, %v576
  %578 = vdwg.mxu0
  %579 = vmatpush.msra.mxu0 0.0
  %580 = vmatpush.msra.mxu0 0.0
  %581 = vmatpush.msra.mxu0 0.0
  %582 = vmatpush.msra.mxu0 0.0
  %583 = vmatpush.msra.mxu0 0.0
  %584 = vmatpush.msra.mxu0 0.0
  %585 = vmatpush.msra.mxu0 0.0
  %586 = vmatpush.msra.mxu0 0.0
  %587 = vmatpush.msra.mxu0 %v32
  %588 = vmatpush.msra.mxu0 %v30
  %589 = vmatpush.msra.mxu0 %v28
  %590 = vmatpush.msra.mxu0 %v26
  %591 = vmatpush.msra.mxu0 %v24
  %592 = vmatpush.msra.mxu0 %v22
  %593 = vmatpush.msra.mxu0 %v20
  %594 = vmatpush.msra.mxu0 %v18
  %595 = vmatmul.f32.gmra.mxu0 %v557
  %v596 = vpop.f32.mrf.mxu0
  %v597 = vadd.f32 0.0, %v596
  %598 = vdwg.mxu0
  %v599 = vadd.f32 %v554, %v577
  %v600 = vadd.f32 %v555, %v597
  %v601 = vxor.u32 %v599, 2147483648
  %v602 = vxor.u32 %v600, 2147483648
  %v603 = vmul.f32 %v601, 1.442695
  %v604 = vpow.pop %v603
  %v605 = vmul.f32 %v602, 1.442695
  %v606 = vpow.pop %v605
  %v607 = vadd.f32 %v604, 1.0
  %v608 = vadd.f32 %v606, 1.0
  %v609 = vrcp.pop %v607
  %v610 = vmul.f32 %v607, %v609
  %v611 = vsub.f32 1.0, %v610
  %v612 = vmul.f32 %v609, %v611
  %v613 = vadd.f32 %v609, %v612
  %vm614 = vweird.f32 %v607
  %vm615 = vweird.f32 %v609
  %vm616 = vmor %vm614, %vm615
  %v617 = vsel %vm616, %v609, %v613
  %v618 = vand.u32 2147483647, %v607
  %vm619 = vcmp.eq.f32.partialorder %v618, 8.507059e+37
  %v620 = vand.u32 %v607, 2147483648
  %v621 = vor.u32 1.1754944e-38, %v620
  %v622 = vsel %vm619, %v621, %v617
  %v623 = vmul.f32 1.0, %v622
  %v624 = vrcp.pop %v608
  %v625 = vmul.f32 %v608, %v624
  %v626 = vsub.f32 1.0, %v625
  %v627 = vmul.f32 %v624, %v626
  %v628 = vadd.f32 %v624, %v627
  %vm629 = vweird.f32 %v608
  %vm630 = vweird.f32 %v624
  %vm631 = vmor %vm629, %vm630
  %v632 = vsel %vm631, %v624, %v628
  %v633 = vand.u32 2147483647, %v608
  %vm634 = vcmp.eq.f32.partialorder %v633, 8.507059e+37
  %v635 = vand.u32 %v608, 2147483648
  %v636 = vor.u32 1.1754944e-38, %v635
  %v637 = vsel %vm634, %v636, %v632
  %v638 = vmul.f32 1.0, %v637
  %v639 = vtanh.pop %v600
  %v640 = vmul.f32 %v623, %v546
  %642 = vrot.lane.b32.xlu0 %v639, 64
  %v643 = vpop.permute.xlu0 %642
  %v645 = vmul.f32 %v623, %v643
  %647 = vrot.lane.b32.xlu0 %v645, 64
  %v648 = vpop.permute.xlu0 %647
  %v650 = vadd.f32 %v640, %v648
  %v651 = vtanh.pop %v650
  %653 = vrot.lane.b32.xlu0 %v651, 64
  %v654 = vpop.permute.xlu0 %653
  %v656 = vmul.f32 %v638, %v654
  %s657 = scalar_lea.vmem %s0, 96
  %v658 = vld [vmem:[%s657] sm:$0xff]
  %v659 = vld [vmem:[%s657 + $0x8] sm:$0xff]
  %v661 = vsel %vm35, %v656, 0
  %663 = vmatpush.msra.mxu0 0.0
  %664 = vmatpush.msra.mxu0 0.0
  %665 = vmatpush.msra.mxu0 0.0
  %666 = vmatpush.msra.mxu0 0.0
  %667 = vmatpush.msra.mxu0 0.0
  %668 = vmatpush.msra.mxu0 0.0
  %669 = vmatpush.msra.mxu0 0.0
  %670 = vmatpush.msra.mxu0 0.0
  %671 = vmatpush.msra.mxu0 %v31
  %672 = vmatpush.msra.mxu0 %v29
  %673 = vmatpush.msra.mxu0 %v27
  %674 = vmatpush.msra.mxu0 %v25
  %675 = vmatpush.msra.mxu0 %v23
  %676 = vmatpush.msra.mxu0 %v21
  %677 = vmatpush.msra.mxu0 %v19
  %678 = vmatpush.msra.mxu0 %v17
  %679 = vmatmul.f32.gmra.mxu0 %v661
  %v680 = vpop.f32.mrf.mxu0
  %v681 = vadd.f32 0.0, %v680
  %682 = vdwg.mxu0
  %683 = vmatpush.msra.mxu0 0.0
  %684 = vmatpush.msra.mxu0 0.0
  %685 = vmatpush.msra.mxu0 0.0
  %686 = vmatpush.msra.mxu0 0.0
  %687 = vmatpush.msra.mxu0 0.0
  %688 = vmatpush.msra.mxu0 0.0
  %689 = vmatpush.msra.mxu0 0.0
  %690 = vmatpush.msra.mxu0 0.0
  %691 = vmatpush.msra.mxu0 %v32
  %692 = vmatpush.msra.mxu0 %v30
  %693 = vmatpush.msra.mxu0 %v28
  %694 = vmatpush.msra.mxu0 %v26
  %695 = vmatpush.msra.mxu0 %v24
  %696 = vmatpush.msra.mxu0 %v22
  %697 = vmatpush.msra.mxu0 %v20
  %698 = vmatpush.msra.mxu0 %v18
  %699 = vmatmul.f32.gmra.mxu0 %v661
  %v700 = vpop.f32.mrf.mxu0
  %v701 = vadd.f32 0.0, %v700
  %702 = vdwg.mxu0
  %v703 = vadd.f32 %v658, %v681
  %v704 = vadd.f32 %v659, %v701
  %v705 = vxor.u32 %v703, 2147483648
  %v706 = vxor.u32 %v704, 2147483648
  %v707 = vmul.f32 %v705, 1.442695
  %v708 = vpow.pop %v707
  %v709 = vmul.f32 %v706, 1.442695
  %v710 = vpow.pop %v709
  %v711 = vadd.f32 %v708, 1.0
  %v712 = vadd.f32 %v710, 1.0
  %v713 = vrcp.pop %v711
  %v714 = vmul.f32 %v711, %v713
  %v715 = vsub.f32 1.0, %v714
  %v716 = vmul.f32 %v713, %v715
  %v717 = vadd.f32 %v713, %v716
  %vm718 = vweird.f32 %v711
  %vm719 = vweird.f32 %v713
  %vm720 = vmor %vm718, %vm719
  %v721 = vsel %vm720, %v713, %v717
  %v722 = vand.u32 2147483647, %v711
  %vm723 = vcmp.eq.f32.partialorder %v722, 8.507059e+37
  %v724 = vand.u32 %v711, 2147483648
  %v725 = vor.u32 1.1754944e-38, %v724
  %v726 = vsel %vm723, %v725, %v721
  %v727 = vmul.f32 1.0, %v726
  %v728 = vrcp.pop %v712
  %v729 = vmul.f32 %v712, %v728
  %v730 = vsub.f32 1.0, %v729
  %v731 = vmul.f32 %v728, %v730
  %v732 = vadd.f32 %v728, %v731
  %vm733 = vweird.f32 %v712
  %vm734 = vweird.f32 %v728
  %vm735 = vmor %vm733, %vm734
  %v736 = vsel %vm735, %v728, %v732
  %v737 = vand.u32 2147483647, %v712
  %vm738 = vcmp.eq.f32.partialorder %v737, 8.507059e+37
  %v739 = vand.u32 %v712, 2147483648
  %v740 = vor.u32 1.1754944e-38, %v739
  %v741 = vsel %vm738, %v740, %v736
  %v742 = vmul.f32 1.0, %v741
  %v743 = vtanh.pop %v704
  %v744 = vmul.f32 %v727, %v650
  %746 = vrot.lane.b32.xlu0 %v743, 64
  %v747 = vpop.permute.xlu0 %746
  %v749 = vmul.f32 %v727, %v747
  %751 = vrot.lane.b32.xlu0 %v749, 64
  %v752 = vpop.permute.xlu0 %751
  %v754 = vadd.f32 %v744, %v752
  %v755 = vtanh.pop %v754
  %757 = vrot.lane.b32.xlu0 %v755, 64
  %v758 = vpop.permute.xlu0 %757
  %v760 = vmul.f32 %v742, %v758
  %s761 = scalar_lea.vmem %s0, 112
  %v762 = vld [vmem:[%s761] sm:$0xff]
  %v763 = vld [vmem:[%s761 + $0x8] sm:$0xff]
  %v765 = vsel %vm35, %v760, 0
  %767 = vmatpush.msra.mxu0 0.0
  %768 = vmatpush.msra.mxu0 0.0
  %769 = vmatpush.msra.mxu0 0.0
  %770 = vmatpush.msra.mxu0 0.0
  %771 = vmatpush.msra.mxu0 0.0
  %772 = vmatpush.msra.mxu0 0.0
  %773 = vmatpush.msra.mxu0 0.0
  %774 = vmatpush.msra.mxu0 0.0
  %775 = vmatpush.msra.mxu0 %v31
  %776 = vmatpush.msra.mxu0 %v29
  %777 = vmatpush.msra.mxu0 %v27
  %778 = vmatpush.msra.mxu0 %v25
  %779 = vmatpush.msra.mxu0 %v23
  %780 = vmatpush.msra.mxu0 %v21
  %781 = vmatpush.msra.mxu0 %v19
  %782 = vmatpush.msra.mxu0 %v17
  %783 = vmatmul.f32.gmra.mxu0 %v765
  %v784 = vpop.f32.mrf.mxu0
  %v785 = vadd.f32 0.0, %v784
  %786 = vdwg.mxu0
  %787 = vmatpush.msra.mxu0 0.0
  %788 = vmatpush.msra.mxu0 0.0
  %789 = vmatpush.msra.mxu0 0.0
  %790 = vmatpush.msra.mxu0 0.0
  %791 = vmatpush.msra.mxu0 0.0
  %792 = vmatpush.msra.mxu0 0.0
  %793 = vmatpush.msra.mxu0 0.0
  %794 = vmatpush.msra.mxu0 0.0
  %795 = vmatpush.msra.mxu0 %v32
  %796 = vmatpush.msra.mxu0 %v30
  %797 = vmatpush.msra.mxu0 %v28
  %798 = vmatpush.msra.mxu0 %v26
  %799 = vmatpush.msra.mxu0 %v24
  %800 = vmatpush.msra.mxu0 %v22
  %801 = vmatpush.msra.mxu0 %v20
  %802 = vmatpush.msra.mxu0 %v18
  %803 = vmatmul.f32.gmra.mxu0 %v765
  %v804 = vpop.f32.mrf.mxu0
  %v805 = vadd.f32 0.0, %v804
  %806 = vdwg.mxu0
  %v807 = vadd.f32 %v762, %v785
  %v808 = vadd.f32 %v763, %v805
  %v809 = vxor.u32 %v807, 2147483648
  %v810 = vxor.u32 %v808, 2147483648
  %v811 = vmul.f32 %v809, 1.442695
  %v812 = vpow.pop %v811
  %v813 = vmul.f32 %v810, 1.442695
  %v814 = vpow.pop %v813
  %v815 = vadd.f32 %v812, 1.0
  %v816 = vadd.f32 %v814, 1.0
  %v817 = vrcp.pop %v815
  %v818 = vmul.f32 %v815, %v817
  %v819 = vsub.f32 1.0, %v818
  %v820 = vmul.f32 %v817, %v819
  %v821 = vadd.f32 %v817, %v820
  %vm822 = vweird.f32 %v815
  %vm823 = vweird.f32 %v817
  %vm824 = vmor %vm822, %vm823
  %v825 = vsel %vm824, %v817, %v821
  %v826 = vand.u32 2147483647, %v815
  %vm827 = vcmp.eq.f32.partialorder %v826, 8.507059e+37
  %v828 = vand.u32 %v815, 2147483648
  %v829 = vor.u32 1.1754944e-38, %v828
  %v830 = vsel %vm827, %v829, %v825
  %v831 = vmul.f32 1.0, %v830
  %v832 = vrcp.pop %v816
  %v833 = vmul.f32 %v816, %v832
  %v834 = vsub.f32 1.0, %v833
  %v835 = vmul.f32 %v832, %v834
  %v836 = vadd.f32 %v832, %v835
  %vm837 = vweird.f32 %v816
  %vm838 = vweird.f32 %v832
  %vm839 = vmor %vm837, %vm838
  %v840 = vsel %vm839, %v832, %v836
  %v841 = vand.u32 2147483647, %v816
  %vm842 = vcmp.eq.f32.partialorder %v841, 8.507059e+37
  %v843 = vand.u32 %v816, 2147483648
  %v844 = vor.u32 1.1754944e-38, %v843
  %v845 = vsel %vm842, %v844, %v840
  %v846 = vmul.f32 1.0, %v845
  %v847 = vtanh.pop %v808
  %v848 = vmul.f32 %v831, %v754
  %850 = vrot.lane.b32.xlu0 %v847, 64
  %v851 = vpop.permute.xlu0 %850
  %v853 = vmul.f32 %v831, %v851
  %855 = vrot.lane.b32.xlu0 %v853, 64
  %v856 = vpop.permute.xlu0 %855
  %v858 = vadd.f32 %v848, %v856
  %v859 = vtanh.pop %v858
  %861 = vrot.lane.b32.xlu0 %v859, 64
  %v862 = vpop.permute.xlu0 %861
  %v864 = vmul.f32 %v846, %v862
  %v865 = vld [vmem:[%s3] sm:$0x1]
  %v866 = vld [vmem:[%s3 + $0x1] sm:$0x1]
  %v867 = vld [vmem:[%s3 + $0x2] sm:$0x1]
  %v868 = vld [vmem:[%s3 + $0x3] sm:$0x1]
  %v869 = vld [vmem:[%s3 + $0x4] sm:$0x1]
  %v870 = vld [vmem:[%s2] sm:$0xff]
  %v871 = vld [vmem:[%s2 + $0x8] sm:$0xff]
  %v872 = vld [vmem:[%s2 + $0x10] sm:$0xff]
  %v873 = vld [vmem:[%s2 + $0x18] sm:$0xff]
  %v874 = vld [vmem:[%s2 + $0x20] sm:$0xff]
  %v875 = vld [vmem:[%s2 + $0x28] sm:$0xff]
  %v876 = vld [vmem:[%s2 + $0x30] sm:$0xff]
  %v877 = vld [vmem:[%s2 + $0x38] sm:$0xff]
  %v878 = vperm.slane %v865, 0
  %v880 = vsel %vm35, %v864, 0
  %882 = vmatpush.msra.mxu0 0.0
  %883 = vmatpush.msra.mxu0 0.0
  %884 = vmatpush.msra.mxu0 0.0
  %885 = vmatpush.msra.mxu0 0.0
  %886 = vmatpush.msra.mxu0 0.0
  %887 = vmatpush.msra.mxu0 0.0
  %888 = vmatpush.msra.mxu0 0.0
  %889 = vmatpush.msra.mxu0 0.0
  %890 = vmatpush.msra.mxu0 %v877
  %891 = vmatpush.msra.mxu0 %v876
  %892 = vmatpush.msra.mxu0 %v875
  %893 = vmatpush.msra.mxu0 %v874
  %894 = vmatpush.msra.mxu0 %v873
  %895 = vmatpush.msra.mxu0 %v872
  %896 = vmatpush.msra.mxu0 %v871
  %897 = vmatpush.msra.mxu0 %v870
  %898 = vmatmul.f32.gmra.mxu0 %v880
  %v899 = vpop.f32.mrf.mxu0
  %v900 = vadd.f32 %v878, %v899
  %901 = vdwg.mxu0
  %v902 = vmax.f32 %v900, 0.0
  %vm903 = vcmask 261120
  %v904 = vsel %vm903, %v902, 0.0
  %905 = vadd.xlane.f32.xlu0 %v904
  %v906 = vpop.xlane.xlu0 %905
  %v907 = vrcp.pop 32.0
  %v908 = vmul.f32 32.0, %v907
  %v909 = vsub.f32 1.0, %v908
  %v910 = vmul.f32 %v907, %v909
  %v911 = vadd.f32 %v907, %v910
  %vm912 = vweird.f32 %v907
  %v913 = vsel %vm912, %v907, %v911
  %v914 = vmul.f32 %v906, %v913
  %v915 = vsub.f32 %v902, %v914
  %v916 = vmul.f32 %v915, %v915
  %v917 = vsel %vm903, %v916, 0.0
  %918 = vadd.xlane.f32.xlu0 %v917
  %v919 = vpop.xlane.xlu0 %918
  %v920 = vmul.f32 %v919, %v913
  %v921 = vadd.f32 %v920, 1e-05
  %v922 = vrsqrt.pop %v921
  %v923 = vmul.f32 %v922, %v921
  %v924 = vmul.f32 %v923, %v922
  %v925 = vmul.f32 0.5, %v924
  %v926 = vsub.f32 1.5, %v925
  %v927 = vmul.f32 %v922, %v926
  %vm928 = vweird.f32 %v921
  %vm929 = vweird.f32 %v922
  %vm930 = vmor %vm928, %vm929
  %v931 = vsel %vm930, %v922, %v927
  %v932 = vmul.f32 %v915, %v931
  %v933 = vperm.slane %v866, 0
  %v934 = vmul.f32 %v932, %v933
  %v935 = vperm.slane %v867, 0
  %v936 = vadd.f32 %v934, %v935
  %938 = vset.pattern.permute.xlu0 0
  %939 = vperm.xlu0 %938, %v869
  %v940 = vpop.permute.xlu0 %939
  %v943 = vsel %vm903, %v868, 0
  %v946 = vsel %vm903, %v936, 0
  %948 = vmatpush.xpose.msra.mxu0 0.0
  %949 = vmatpush.xpose.msra.mxu0 0.0
  %950 = vmatpush.xpose.msra.mxu0 0.0
  %951 = vmatpush.xpose.msra.mxu0 0.0
  %952 = vmatpush.xpose.msra.mxu0 0.0
  %953 = vmatpush.xpose.msra.mxu0 0.0
  %954 = vmatpush.xpose.msra.mxu0 0.0
  %955 = vmatpush.xpose.msra.mxu0 0.0
  %956 = vmatpush.xpose.msra.mxu0 0.0
  %957 = vmatpush.xpose.msra.mxu0 0.0
  %958 = vmatpush.xpose.msra.mxu0 0.0
  %959 = vmatpush.xpose.msra.mxu0 0.0
  %960 = vmatpush.xpose.msra.mxu0 0.0
  %961 = vmatpush.xpose.msra.mxu0 0.0
  %962 = vmatpush.xpose.msra.mxu0 0.0
  %963 = vmatpush.xpose.msra.mxu0 %v946
  %964 = vmatmul.f32.gmra.mxu0 %v943
  %v965 = vpop.f32.mrf.mxu0
  %v966 = vadd.f32 %v940, %v965
  %967 = vdwg.mxu0
  %vm968 = vcmask 57344
  %969 = vst.msk [vmem:[%s4] sm:$0x1] %vm968, %v966
  // Predicated region
  $region18: #{critic_forward.1} parent=0 // pred_check
    _
  $region19: #{critic_forward.1} parent=0 // pred_check_branch
    %971 = sbr.rel (0) target = $region21
  $region20: #{critic_forward.1} parent=0 // pred_region
    _
  $region21: #{critic_forward.1} parent=0 // pred_fallthru
    _
  // Predicated region
  $region22: #{critic_forward.1} parent=0 // pred_check
    _
  $region23: #{critic_forward.1} parent=0 // pred_check_branch
    %973 = sbr.rel (0) target = $region25
  $region24: #{critic_forward.1} parent=0 // pred_region
    _
  $region25: #{critic_forward.1} parent=0 // pred_fallthru
    _

</llo_original>
